<compile_context>
chip_gen: v6e
topology: v6e:2x2x1
jax: 0.10.0
libtpu: 0.0.40
codegen_flags: <defaults>
</compile_context>

<pallas_src>
import functools
import math

import jax
import jax.numpy as jnp
from jax.experimental import pallas as pl
from jax.experimental.pallas import tpu as pltpu


def _tensorcores_per_device():
    """2 on dual-TensorCore chips (v7x); 1 on v2..v6 (one TC per device)."""
    try:
        kind = str(jax.devices()[0].device_kind).lower()
    except Exception:
        return 1
    if any(tag in kind for tag in ("v2", "v3", "v4", "v5", "v6")):
        return 1
    return 2 if "7" in kind else 1


def _vmem_capacity_bytes():
    try:
        cap = getattr(pltpu.get_tpu_info(), "vmem_capacity_bytes", None)
        if cap:
            return int(cap)
    except Exception:
        pass
    return 64 * 1024 * 1024  # conservative (v7x per-TC capacity)


def _round_down(x, m):
    return max(m, (x // m) * m)


def _ngce_mae_kernel(n_ref, pred_ref, labels_ref, out_ref, acc_ref,
                     *, alpha, beta, q, num_classes, tile_n):
    i = pl.program_id(1)                      # reduction axis (arbitrary)
    npt = pl.num_programs(1)
    block = pl.program_id(0) * npt + i        # global row-tile index (unclamped)

    @pl.when(i == 0)
    def _init():
        acc_ref[...] = jnp.zeros_like(acc_ref)

    logits = pred_ref[...].astype(jnp.float32)          # (TN, C)
    labels = labels_ref[...]                             # (TN, 1) int32

    # validity mask for rows past the true batch size (boundary blocks read
    # unspecified data) -- applied to the logits BEFORE any exp so NaN garbage
    # can never reach the accumulator.
    row = jax.lax.broadcasted_iota(jnp.int32, (tile_n, 1), 0)
    valid = (block * tile_n + row) < n_ref[0]             # (TN, 1) bool
    logits = jnp.where(valid, logits, 0.0)

    # boolean label mask (no f32 one-hot materialization)
    class_ids = jax.lax.broadcasted_iota(jnp.int32, logits.shape, 1)
    is_label = class_ids == labels                        # (TN, C) bool

    # softmax pieces
    m = jnp.max(logits, axis=1, keepdims=True)
    z = logits - m
    e = jnp.exp(z)                                        # 1 exp / element
    sum_e = jnp.sum(e, axis=1, keepdims=True)
    lse = jnp.log(sum_e)                                  # 1 log / row
    log_p = z - lse

    # single label select: both MAE's softmax[label] and NGCE's clamp(.)^q come
    # from log_p_label.
    log_p_label = jnp.sum(jnp.where(is_label, log_p, 0.0), axis=1, keepdims=True)
    p_label = jnp.exp(log_p_label)                        # (TN, 1)
    mae = 1.0 - p_label

    # NGCE: (1 - pc[label]^q) / (C - sum_c pc_c^q), pc = clamp(softmax, 1e-7, 1)
    # pc^q computed in log domain; upper clamp at 1.0 is inactive (log_p <= 0).
    log_eps = jnp.float32(math.log(1e-7))
    pcq = jnp.exp(q * jnp.maximum(log_p, log_eps))        # 1 exp / element
    pcq_label = jnp.exp(q * jnp.maximum(log_p_label, log_eps))
    denom = jnp.float32(num_classes) - jnp.sum(pcq, axis=1, keepdims=True)
    ngce = (1.0 - pcq_label) / denom

    # fold alpha/beta into a single per-row accumulator; zero padded rows
    acc_ref[...] += jnp.where(valid, alpha * ngce + beta * mae, 0.0)

    @pl.when(i == npt - 1)
    def _finalize():
        total = jnp.sum(acc_ref[...])                     # this part's partial sum
        out_ref[...] = jnp.zeros_like(out_ref) + total    # lane-dense (8,128) store


def ngce_and_mae(pred, labels, *, alpha, beta, num_classes, q=0.7,
                 n_valid=None, num_parts=None, tile_rows=None):
    """alpha * NGCE(pred, labels) + beta * MAE(pred, labels); returns a scalar.

    pred:   (N, C) logits, f32 or bf16 (bf16 recommended: halves HBM traffic).
    labels: (N,) integer class ids.
    n_valid: optional true batch size (may be a traced scalar) when pred is a
             padded fixed-size batch; defaults to N.
    """
    n, c = pred.shape
    assert c == num_classes
    if n_valid is None:
        n_valid = n

    labels2d = labels.astype(jnp.int32).reshape(n, 1)

    in_bytes = jnp.dtype(pred.dtype).itemsize
    align = {4: 8, 2: 16, 1: 32}.get(in_bytes, 8)
    if n < align:                      # tiny batches only: negligible copy
        pred = jnp.pad(pred, ((0, align - n), (0, 0)))
        labels2d = jnp.pad(labels2d, ((0, align - n), (0, 0)))
    n_rows = max(n, align)

    # --- generation-aware launch parameters --------------------------------
    vmem_cap = _vmem_capacity_bytes()
    vmem_limit = int(min(vmem_cap * 3 // 4, 112 * 1024 * 1024))
    budget = vmem_limit // 2           # double-buffered input + f32 temporaries
    c_pad = max(c, 128)                # narrow class dims are lane-padded in VMEM
    per_row = c_pad * (2 * in_bytes + 24) + 64
    tile_n = min(1024, max(align, budget // per_row), _round_down(n_rows, align))
    if tile_rows is not None:
        tile_n = min(int(tile_rows), tile_n)
    tile_n = _round_down(int(tile_n), align)

    total_tiles = pl.cdiv(n_rows, tile_n)
    if num_parts is None:
        num_parts = _tensorcores_per_device()
    num_parts = max(1, min(int(num_parts), total_tiles))
    npt = pl.cdiv(total_tiles, num_parts)

    # Clamp the block index so a part's trailing (masked) iterations never map a
    # DMA outside the array; their rows fail the in-kernel validity test anyway.
    def row_map(p, i, n_ref):
        return (jnp.minimum(p * npt + i, total_tiles - 1), 0)

    kernel = functools.partial(
        _ngce_mae_kernel,
        alpha=float(alpha), beta=float(beta), q=float(q),
        num_classes=int(num_classes), tile_n=int(tile_n))

    out = pl.pallas_call(
        kernel,
        out_shape=jax.ShapeDtypeStruct((8 * num_parts, 128), jnp.float32),
        grid_spec=pltpu.PrefetchScalarGridSpec(
            num_scalar_prefetch=1,
            grid=(num_parts, npt),
            in_specs=[
                pl.BlockSpec((tile_n, c), row_map),
                pl.BlockSpec((tile_n, 1), row_map),
            ],
            out_specs=pl.BlockSpec((8, 128), lambda p, i, n_ref: (p, 0)),
            scratch_shapes=[pltpu.VMEM((tile_n, 1), jnp.float32)],
        ),
        compiler_params=pltpu.CompilerParams(
            dimension_semantics=("parallel", "arbitrary"),
            vmem_limit_bytes=vmem_limit),
    )(jnp.reshape(jnp.asarray(n_valid, jnp.int32), (1,)), pred, labels2d)

    partials = out[::8, 0]             # one partial sum per part
    return jnp.sum(partials) / jnp.asarray(n_valid, jnp.float32)


def _reference(pred, labels, *, alpha, beta, num_classes, q=0.7):
    p = jax.nn.softmax(pred.astype(jnp.float32), axis=1)
    one_hot = jax.nn.one_hot(labels, num_classes, dtype=jnp.float32)
    # MAE
    mae = 1.0 - jnp.sum(one_hot * p, axis=1)
    mae_loss = beta * jnp.mean(mae)
    # NGCE
    pc = jnp.clip(p, 1e-7, 1.0)
    num = 1.0 - jnp.power(jnp.sum(one_hot * pc, axis=1), q)
    den = num_classes - jnp.sum(jnp.power(pc, q), axis=1)
    ngce_loss = alpha * jnp.mean(num / den)
    return ngce_loss + mae_loss


if __name__ == "__main__":
    key = jax.random.PRNGKey(0)
    k1, k2, k3, k4 = jax.random.split(key, 4)
    alpha, beta, q, C = 1.0, 1.0, 0.7, 10

    # 1) small ragged batch (exercises the partial boundary block + row mask)
    N = 19
    pred = jax.random.normal(k1, (N, C), dtype=jnp.float32)
    labels = jax.random.randint(k2, (N,), 0, C, dtype=jnp.int32)
    loss = jax.block_until_ready(
        ngce_and_mae(pred, labels, alpha=alpha, beta=beta, num_classes=C, q=q))
    ref = _reference(pred, labels, alpha=alpha, beta=beta, num_classes=C, q=q)
    assert jnp.allclose(loss, ref, rtol=1e-5, atol=1e-5), (loss, ref)

    # 2) multi-tile reduction with a forced 2-part split (exercises the VMEM
    #    accumulator, the clamped duplicate tail block, and the parallel axis)
    N2 = 40
    pred2 = jax.random.normal(k3, (N2, C), dtype=jnp.float32)
    labels2 = jax.random.randint(k4, (N2,), 0, C, dtype=jnp.int32)
    loss2 = jax.block_until_ready(
        ngce_and_mae(pred2, labels2, alpha=alpha, beta=beta, num_classes=C, q=q,
                     num_parts=2, tile_rows=16))
    ref2 = _reference(pred2, labels2, alpha=alpha, beta=beta, num_classes=C, q=q)
    assert jnp.allclose(loss2, ref2, rtol=1e-5, atol=1e-5), (loss2, ref2)

    # 3) bf16 logits stream straight through the pallas_call (kernel upcasts)
    pred_bf16 = pred2.astype(jnp.bfloat16)
    loss3 = jax.block_until_ready(
        ngce_and_mae(pred_bf16, labels2, alpha=alpha, beta=beta, num_classes=C, q=q))
    ref3 = _reference(pred_bf16.astype(jnp.float32), labels2,
                      alpha=alpha, beta=beta, num_classes=C, q=q)
    assert jnp.allclose(loss3, ref3, rtol=1e-3, atol=1e-3), (loss3, ref3)

    print("KERNEL_OK")
</pallas_src>

<mosaic_0001>
module attributes {stable_mosaic.version = 11 : i64} {
  func.func @_ngce_mae_kernel(%arg0: i32, %arg1: i32, %arg2: memref<1xi32, #tpu.memory_space<smem>>, %arg3: memref<16x10xf32, #tpu.memory_space<vmem>>, %arg4: memref<16x1xi32, #tpu.memory_space<vmem>>, %arg5: memref<8x128xf32, #tpu.memory_space<vmem>>, %arg6: memref<16x1xf32, #tpu.memory_space<vmem>>) attributes {dimension_semantics = [#tpu.dimension_semantics<parallel>, #tpu.dimension_semantics<arbitrary>], iteration_bounds = array<i64: 1, 2>, scalar_prefetch = 1 : i64, scratch_operands = 1 : i64, tpu.core_type = #tpu.core_type<tc>, window_params = [{transform_indices = @transform_0, window_bounds = array<i64: 16, 10>}, {transform_indices = @transform_1, window_bounds = array<i64: 16, 1>}, {transform_indices = @transform_2, window_bounds = array<i64: 8, 128>}]} {
    %c2_i32 = arith.constant 2 : i32
    %0 = arith.muli %arg0, %c2_i32 : i32
    %1 = arith.addi %0, %arg1 : i32
    %c0_i32 = arith.constant 0 : i32
    %2 = arith.cmpi eq, %arg1, %c0_i32 : i32
    %3 = arith.extui %2 : i1 to i32
    %c0_i32_0 = arith.constant 0 : i32
    %4 = arith.cmpi ne, %3, %c0_i32_0 : i32
    scf.if %4 {
      %cst_25 = arith.constant 0.000000e+00 : f32
      %68 = vector.broadcast %cst_25 : f32 to vector<16x1xf32>
      %c0_26 = arith.constant 0 : index
      %c0_27 = arith.constant 0 : index
      %69 = vector.load %arg6[%c0_26, %c0_27] : memref<16x1xf32, #tpu.memory_space<vmem>>, vector<16x1xf32>
      tpu.vector_store %arg6[%c0_26, %c0_27], %68 {strides = array<i32>} : memref<16x1xf32, #tpu.memory_space<vmem>>, vector<16x1xf32>,
    } else {
    }
    %c0 = arith.constant 0 : index
    %c0_1 = arith.constant 0 : index
    %5 = vector.load %arg3[%c0, %c0_1] : memref<16x10xf32, #tpu.memory_space<vmem>>, vector<16x10xf32>
    %c0_2 = arith.constant 0 : index
    %c0_3 = arith.constant 0 : index
    %6 = vector.load %arg4[%c0_2, %c0_3] : memref<16x1xi32, #tpu.memory_space<vmem>>, vector<16x1xi32>
    %7 = tpu.iota {dimensions = array<i32: 0>} : vector<16x1xi32>
    %c16_i32 = arith.constant 16 : i32
    %8 = arith.muli %1, %c16_i32 : i32
    %9 = vector.broadcast %8 : i32 to vector<16x1xi32>
    %10 = arith.addi %9, %7 : vector<16x1xi32>
    %c0_4 = arith.constant 0 : index
    %11 = memref.load %arg2[%c0_4] : memref<1xi32, #tpu.memory_space<smem>>
    %12 = vector.broadcast %11 : i32 to vector<16x1xi32>
    %13 = arith.cmpi slt, %10, %12 : vector<16x1xi32>
    %cst = arith.constant 0.000000e+00 : f32
    %14 = vector.shape_cast %13 : vector<16x1xi1> to vector<16x1xi1>
    %15 = vector.broadcast %14 : vector<16x1xi1> to vector<16x10xi1>
    %16 = vector.broadcast %cst : f32 to vector<16x10xf32>
    %17 = arith.select %15, %5, %16 : vector<16x10xi1>, vector<16x10xf32>
    %18 = tpu.iota {dimensions = array<i32: 1>} : vector<16x10xi32>
    %19 = vector.broadcast %6 : vector<16x1xi32> to vector<16x10xi32>
    %20 = arith.cmpi eq, %18, %19 : vector<16x10xi32>
    %cst_5 = arith.constant dense<0xFF800000> : vector<16xf32>
    %21 = vector.multi_reduction <maximumf>, %17, %cst_5 [1] : vector<16x10xf32> to vector<16xf32>
    %22 = vector.shape_cast %21 : vector<16xf32> to vector<16x1xf32>
    %23 = vector.broadcast %22 : vector<16x1xf32> to vector<16x10xf32>
    %24 = arith.subf %17, %23 : vector<16x10xf32>
    %25 = math.exp %24 : vector<16x10xf32>
    %cst_6 = arith.constant dense<0.000000e+00> : vector<16xf32>
    %26 = vector.multi_reduction <add>, %25, %cst_6 [1] : vector<16x10xf32> to vector<16xf32>
    %27 = vector.shape_cast %26 : vector<16xf32> to vector<16x1xf32>
    %28 = math.log %27 : vector<16x1xf32>
    %29 = vector.broadcast %28 : vector<16x1xf32> to vector<16x10xf32>
    %30 = arith.subf %24, %29 : vector<16x10xf32>
    %cst_7 = arith.constant 0.000000e+00 : f32
    %31 = vector.broadcast %cst_7 : f32 to vector<16x10xf32>
    %32 = arith.select %20, %30, %31 : vector<16x10xi1>, vector<16x10xf32>
    %cst_8 = arith.constant dense<0.000000e+00> : vector<16xf32>
    %33 = vector.multi_reduction <add>, %32, %cst_8 [1] : vector<16x10xf32> to vector<16xf32>
    %34 = vector.shape_cast %33 : vector<16xf32> to vector<16x1xf32>
    %35 = math.exp %34 : vector<16x1xf32>
    %cst_9 = arith.constant 1.000000e+00 : f32
    %36 = vector.broadcast %cst_9 : f32 to vector<16x1xf32>
    %37 = arith.subf %36, %35 : vector<16x1xf32>
    %cst_10 = arith.constant -16.1180954 : f32
    %38 = vector.broadcast %cst_10 : f32 to vector<16x10xf32>
    %39 = arith.maximumf %30, %38 : vector<16x10xf32>
    %cst_11 = arith.constant 0.699999988 : f32
    %40 = vector.broadcast %cst_11 : f32 to vector<16x10xf32>
    %41 = arith.mulf %40, %39 : vector<16x10xf32>
    %42 = math.exp %41 : vector<16x10xf32>
    %cst_12 = arith.constant -16.1180954 : f32
    %43 = vector.broadcast %cst_12 : f32 to vector<16x1xf32>
    %44 = arith.maximumf %34, %43 : vector<16x1xf32>
    %cst_13 = arith.constant 0.699999988 : f32
    %45 = vector.broadcast %cst_13 : f32 to vector<16x1xf32>
    %46 = arith.mulf %45, %44 : vector<16x1xf32>
    %47 = math.exp %46 : vector<16x1xf32>
    %cst_14 = arith.constant dense<0.000000e+00> : vector<16xf32>
    %48 = vector.multi_reduction <add>, %42, %cst_14 [1] : vector<16x10xf32> to vector<16xf32>
    %49 = vector.shape_cast %48 : vector<16xf32> to vector<16x1xf32>
    %cst_15 = arith.constant 1.000000e+01 : f32
    %50 = vector.broadcast %cst_15 : f32 to vector<16x1xf32>
    %51 = arith.subf %50, %49 : vector<16x1xf32>
    %cst_16 = arith.constant 1.000000e+00 : f32
    %52 = vector.broadcast %cst_16 : f32 to vector<16x1xf32>
    %53 = arith.subf %52, %47 : vector<16x1xf32>
    %54 = arith.divf %53, %51 : vector<16x1xf32>
    %c0_17 = arith.constant 0 : index
    %c0_18 = arith.constant 0 : index
    %55 = vector.load %arg6[%c0_17, %c0_18] : memref<16x1xf32, #tpu.memory_space<vmem>>, vector<16x1xf32>
    %cst_19 = arith.constant 1.000000e+00 : f32
    %56 = vector.broadcast %cst_19 : f32 to vector<16x1xf32>
    %57 = arith.mulf %56, %54 : vector<16x1xf32>
    %cst_20 = arith.constant 1.000000e+00 : f32
    %58 = vector.broadcast %cst_20 : f32 to vector<16x1xf32>
    %59 = arith.mulf %58, %37 : vector<16x1xf32>
    %60 = arith.addf %57, %59 : vector<16x1xf32>
    %cst_21 = arith.constant 0.000000e+00 : f32
    %61 = vector.broadcast %cst_21 : f32 to vector<16x1xf32>
    %62 = arith.select %13, %60, %61 : vector<16x1xi1>, vector<16x1xf32>
    %63 = arith.addf %55, %62 : vector<16x1xf32>
    %c0_22 = arith.constant 0 : index
    %c0_23 = arith.constant 0 : index
    %64 = vector.load %arg6[%c0_22, %c0_23] : memref<16x1xf32, #tpu.memory_space<vmem>>, vector<16x1xf32>
    tpu.vector_store %arg6[%c0_22, %c0_23], %63 {strides = array<i32>} : memref<16x1xf32, #tpu.memory_space<vmem>>, vector<16x1xf32>,
    %c1_i32 = arith.constant 1 : i32
    %65 = arith.cmpi eq, %arg1, %c1_i32 : i32
    %66 = arith.extui %65 : i1 to i32
    %c0_i32_24 = arith.constant 0 : i32
    %67 = arith.cmpi ne, %66, %c0_i32_24 : i32
    scf.if %67 {
      %c0_25 = arith.constant 0 : index
      %c0_26 = arith.constant 0 : index
      %68 = vector.load %arg6[%c0_25, %c0_26] : memref<16x1xf32, #tpu.memory_space<vmem>>, vector<16x1xf32>
      %69 = vector.shape_cast %68 : vector<16x1xf32> to vector<1x16x1xf32>
      %cst_27 = arith.constant dense<0.000000e+00> : vector<1xf32>
      %70 = vector.multi_reduction <add>, %69, %cst_27 [1, 2] : vector<1x16x1xf32> to vector<1xf32>
      %71 = vector.shape_cast %70 : vector<1xf32> to vector<1x1x1xf32>
      %72 = vector.extract %71[0, 0, 0] : f32 from vector<1x1x1xf32>
      %cst_28 = arith.constant 0.000000e+00 : f32
      %73 = vector.broadcast %cst_28 : f32 to vector<8x128xf32>
      %74 = vector.broadcast %72 : f32 to vector<8x128xf32>
      %75 = arith.addf %73, %74 : vector<8x128xf32>
      %c0_29 = arith.constant 0 : index
      %c0_30 = arith.constant 0 : index
      %76 = vector.load %arg5[%c0_29, %c0_30] : memref<8x128xf32, #tpu.memory_space<vmem>>, vector<8x128xf32>
      tpu.vector_store %arg5[%c0_29, %c0_30], %75 {strides = array<i32>} : memref<8x128xf32, #tpu.memory_space<vmem>>, vector<8x128xf32>,
    } else {
    }
    return
  }
  func.func @transform_0(%arg0: i32, %arg1: i32, %arg2: memref<1xi32, #tpu.memory_space<smem>>) -> (i32, i32) {
    %c2_i32 = arith.constant 2 : i32
    %0 = arith.muli %arg0, %c2_i32 : i32
    %1 = arith.addi %0, %arg1 : i32
    %c1_i32 = arith.constant 1 : i32
    %2 = arith.minsi %1, %c1_i32 : i32
    %c0_i32 = arith.constant 0 : i32
    %c0_i32_0 = arith.constant 0 : i32
    return %2, %c0_i32 : i32, i32
  }
  func.func @transform_1(%arg0: i32, %arg1: i32, %arg2: memref<1xi32, #tpu.memory_space<smem>>) -> (i32, i32) {
    %c2_i32 = arith.constant 2 : i32
    %0 = arith.muli %arg0, %c2_i32 : i32
    %1 = arith.addi %0, %arg1 : i32
    %c1_i32 = arith.constant 1 : i32
    %2 = arith.minsi %1, %c1_i32 : i32
    %c0_i32 = arith.constant 0 : i32
    %c0_i32_0 = arith.constant 0 : i32
    return %2, %c0_i32 : i32, i32
  }
  func.func @transform_2(%arg0: i32, %arg1: i32, %arg2: memref<1xi32, #tpu.memory_space<smem>>) -> (i32, i32) {
    %c0_i32 = arith.constant 0 : i32
    %c0_i32_0 = arith.constant 0 : i32
    return %arg0, %c0_i32 : i32, i32
  }
}

</mosaic_0001>

<llo_original>
// kernel: tpu_custom_call.1
$region0: #{tpu_custom_call.1}
  #allocation0 [shape = 'u32[]', space=smem, size = 0x4, offset = 0x4, fixed_abs, tag = 'smem constant byte address 0x4 - core index']
  #allocation1 [shape = 'u32[144,128]{1,0:T(1,128)}', space=vmem, size = 0x12000, scoped, tag = 'internal scratch']
  #allocation2 [shape = 'f32[16,1]{1,0:T(8,128)}', space=vmem, size = 0x2000, scoped, tag = 'scratch operand']
  #allocation3 [shape = 's32[1]{0}', space=sflag, size = 0x4, scoped, tag = 'scoped memory for tpu_custom_call.1']
  #allocation4 [shape = 's32[1]{0:T(128)S(6)}', space=smem, size = 0x200, scoped, tag = 'prefetched SMEM operand 0']
  %s0 = inlined_call_operand.<no memory space> [shape: s32[1], index: 0, kind: input, shape index: {}]
  %s1 = inlined_call_operand.vmem [shape: f32[19,10], index: 1, kind: input, shape index: {}]
  %s2 = inlined_call_operand.vmem [shape: s32[19,1], index: 2, kind: input, shape index: {}]
  %s3 = inlined_call_operand.hbm [shape: f32[8,128], index: 3, kind: output, shape index: {}]
  %s4 = sld [smem:[#allocation0]]
  $region49: #{tpu_custom_call.1} parent=0
    _
  %s6 = ssub.s32 1, %s4
  %s7 = scalar_select 0, %s6, %s4
  %8 = sst [smem:[#allocation4]] %s0
  $region1: #{tpu_custom_call.1} parent=0
    #allocation5 [shape = 'u8[4096]{0}', space=vmem, size = 0x1000, scoped, tag = 'output window, operand 0, single buffered']
    #allocation6 [shape = 's32[2]{0}', space=sflag, size = 0x8, scoped, tag = 'scoped memory for tpu_custom_call.1']
    %9 = vsyncpa [#allocation6], 0
    loop: start=0, step=1, limit=4
    $region2: #{tpu_custom_call.1} parent=1 // loop_pre_header
      _
    $region3: #{tpu_custom_call.1} parent=1 // loop_header
      %s11 = sphi 0, %s15
      %p12 = scmp.ge.s32.totalorder %s11, 4
      %s18 = sphi 0, %s30
      %s19 = sphi 0, %s26
      %s20 = sphi 0, %s18
      %s21 = sphi 0, %s19
      %s22 = sphi 0, %s20
      %s23 = sphi 0, %s21
      %s41 = sphi 0, %s43
      %s44 = sphi 0, %s41
      %s45 = sphi 0, %s44
      %s61 = sphi 0, %s45
      %s75 = sphi 0, %s77
      %s78 = sphi 0, %s75
      %s79 = sphi 0, %s78
      %s95 = sphi 0, %s79
      %s101 = sphi 0, %s103
      %s104 = sphi 0, %s101
      %s105 = sphi 0, %s104
      %s121 = sphi 0, %s105
    $region4: #{tpu_custom_call.1} parent=1 // loop_header_branch
      %14 = sbr.rel (%p12) target = $region8
    $region5: #{tpu_custom_call.1} parent=1 // loop_body
      %s16 = ssub.s32 %s11, 1
      %s17 = ssub.s32 %s11, 2
      %s24 = sadd.s32 1, %s19
      %p25 = scmp.ge.s32.totalorder %s24, 2
      %s26 = scalar_select %p25, 0, %s24
      %s27 = sadd.s32 1, %s18
      %s28 = scalar_select %p25, %s27, %s18
      %p29 = scmp.ge.s32.totalorder %s28, 1
      %s30 = scalar_select %p29, 0, %s28
      %s31 = smul.u32 %s18, 2
      %s32 = sadd.s32 %s31, %s19
      %p33 = scmp.lt.s32.totalorder %s32, 1
      %s34 = scalar_select %p33, %s32, 1
      %s35 = smul.u32 %s30, 2
      %s36 = sadd.s32 %s35, %s26
      %p37 = scmp.lt.s32.totalorder %s36, 1
      %s38 = scalar_select %p37, %s36, 1
      %s39 = ssub.s32 %s34, %s38
      %p40 = scmp.eq.s32.totalorder %s39, 0
      %s42 = sadd.s32 %s41, 1
      %s43 = scalar_select %p40, %s41, %s42
      %p46 = pneg %p40
      %p47 = scmp.eq.s32.totalorder %s11, 1
      %p48 = por %p46, %p47
      %p49 = scmp.ne.s32.totalorder %s41, %s44
      %p50 = scmp.eq.s32.totalorder %s11, 0
      %p51 = por %p49, %p50
      %p52 = scmp.ne.s32.totalorder %s41, %s44
      %p53 = scmp.eq.s32.totalorder %s16, 1
      %p54 = por %p52, %p53
      %p55 = scmp.ne.s32.totalorder %s44, %s45
      %p56 = scmp.eq.s32.totalorder %s16, 0
      %p57 = por %p55, %p56
      %p58 = scmp.ne.s32.totalorder %s44, %s45
      %p59 = scmp.eq.s32.totalorder %s17, 1
      %p60 = por %p58, %p59
      %p62 = scmp.ne.s32.totalorder %s45, %s61
      %p63 = scmp.eq.s32.totalorder %s17, 0
      %p64 = por %p62, %p63
      %s65 = smul.u32 %s18, 2
      %s66 = sadd.s32 %s65, %s19
      %p67 = scmp.lt.s32.totalorder %s66, 1
      %s68 = scalar_select %p67, %s66, 1
      %s69 = smul.u32 %s30, 2
      %s70 = sadd.s32 %s69, %s26
      %p71 = scmp.lt.s32.totalorder %s70, 1
      %s72 = scalar_select %p71, %s70, 1
      %s73 = ssub.s32 %s68, %s72
      %p74 = scmp.eq.s32.totalorder %s73, 0
      %s76 = sadd.s32 %s75, 1
      %s77 = scalar_select %p74, %s75, %s76
      %p80 = pneg %p74
      %p81 = scmp.eq.s32.totalorder %s11, 1
      %p82 = por %p80, %p81
      %p83 = scmp.ne.s32.totalorder %s75, %s78
      %p84 = scmp.eq.s32.totalorder %s11, 0
      %p85 = por %p83, %p84
      %p86 = scmp.ne.s32.totalorder %s75, %s78
      %p87 = scmp.eq.s32.totalorder %s16, 1
      %p88 = por %p86, %p87
      %p89 = scmp.ne.s32.totalorder %s78, %s79
      %p90 = scmp.eq.s32.totalorder %s16, 0
      %p91 = por %p89, %p90
      %p92 = scmp.ne.s32.totalorder %s78, %s79
      %p93 = scmp.eq.s32.totalorder %s17, 1
      %p94 = por %p92, %p93
      %p96 = scmp.ne.s32.totalorder %s79, %s95
      %p97 = scmp.eq.s32.totalorder %s17, 0
      %p98 = por %p96, %p97
      %s99 = ssub.s32 %s18, %s30
      %p100 = scmp.eq.s32.totalorder %s99, 0
      %s102 = sadd.s32 %s101, 1
      %s103 = scalar_select %p100, %s101, %s102
      %p106 = pneg %p100
      %p107 = scmp.eq.s32.totalorder %s11, 1
      %p108 = por %p106, %p107
      %p109 = scmp.ne.s32.totalorder %s101, %s104
      %p110 = scmp.eq.s32.totalorder %s11, 0
      %p111 = por %p109, %p110
      %p112 = scmp.ne.s32.totalorder %s101, %s104
      %p113 = scmp.eq.s32.totalorder %s16, 1
      %p114 = por %p112, %p113
      %p115 = scmp.ne.s32.totalorder %s104, %s105
      %p116 = scmp.eq.s32.totalorder %s16, 0
      %p117 = por %p115, %p116
      %p118 = scmp.ne.s32.totalorder %s104, %s105
      %p119 = scmp.eq.s32.totalorder %s17, 1
      %p120 = por %p118, %p119
      %p122 = scmp.ne.s32.totalorder %s105, %s121
      %p123 = scmp.eq.s32.totalorder %s17, 0
      %p124 = por %p122, %p123
      %p125 = scmp.le.s32.totalorder 1, %s11
      %p126 = scmp.lt.s32.totalorder %s11, 3
      %p127 = pnand %p125, %p126
      %p128 = pneg %p127
      // Predicated region
      $region9: #{tpu_custom_call.1} parent=5 // pred_check
        _
      $region10: #{tpu_custom_call.1} parent=5 // pred_check_branch
        %130 = sbr.rel (%p127) target = $region12
      $region11: #{tpu_custom_call.1} parent=5 // pred_region
        %s131 = ssub.s32 %s11, 1
      $region12: #{tpu_custom_call.1} parent=5 // pred_fallthru
        _
      %p132 = scmp.lt.s32.totalorder %s11, 2
      // Predicated region
      $region13: #{tpu_custom_call.1} parent=5 // pred_check
        %p133 = pneg %p132
      $region14: #{tpu_custom_call.1} parent=5 // pred_check_branch
        %135 = sbr.rel (%p133) target = $region16
      $region15: #{tpu_custom_call.1} parent=5 // pred_region
        // Predicated region
        $region17: #{tpu_custom_call.1} parent=15 // pred_check
          %p136 = pneg %p51
        $region18: #{tpu_custom_call.1} parent=15 // pred_check_branch
          %138 = sbr.rel (%p136) target = $region20
        $region19: #{tpu_custom_call.1} parent=15 // pred_region
          %s139 = smul.u32 %s18, 2
          %s140 = sadd.s32 %s139, %s19
          %p141 = scmp.lt.s32.totalorder %s140, 1
          %s142 = scalar_select %p141, %s140, 1
          %s143 = smul.u32 2, %s142
          %s144 = ssub.s32 3, %s143
          %p145 = scmp.lt.s32.totalorder %s144, 2
          %s146 = scalar_select %p145, %s144, 2
          %s147 = smul.u32 128, %s146
          %p148 = scmp.lt.s32.totalorder %s143, 2
          %s149 = scalar_select %p148, %s143, 2
          %s150 = smul.addr %s149, 8
          %s151 = scalar_lea.vmem %s1, %s150
          %s152 = smul.u32 %s18, 2
          %s153 = sadd.s32 %s152, %s19
          %p154 = scmp.lt.s32.totalorder %s153, 1
          %s155 = scalar_select %p154, %s153, 1
          %s156 = smul.u32 2, %s155
          %s157 = ssub.s32 3, %s156
          %p158 = scmp.lt.s32.totalorder %s157, 2
          %s159 = scalar_select %p158, %s157, 2
          %s160 = smul.u32 128, %s159
        $region20: #{tpu_custom_call.1} parent=15 // pred_fallthru
          _
        // Predicated region
        $region21: #{tpu_custom_call.1} parent=15 // pred_check
          %p161 = pneg %p85
        $region22: #{tpu_custom_call.1} parent=15 // pred_check_branch
          %163 = sbr.rel (%p161) target = $region24
        $region23: #{tpu_custom_call.1} parent=15 // pred_region
          %s164 = smul.u32 %s18, 2
          %s165 = sadd.s32 %s164, %s19
          %p166 = scmp.lt.s32.totalorder %s165, 1
          %s167 = scalar_select %p166, %s165, 1
          %s168 = smul.u32 2, %s167
          %s169 = ssub.s32 3, %s168
          %p170 = scmp.lt.s32.totalorder %s169, 2
          %s171 = scalar_select %p170, %s169, 2
          %s172 = smul.u32 128, %s171
          %p173 = scmp.lt.s32.totalorder %s168, 2
          %s174 = scalar_select %p173, %s168, 2
          %s175 = smul.addr %s174, 8
          %s176 = scalar_lea.vmem %s2, %s175
          %s177 = smul.u32 %s18, 2
          %s178 = sadd.s32 %s177, %s19
          %p179 = scmp.lt.s32.totalorder %s178, 1
          %s180 = scalar_select %p179, %s178, 1
          %s181 = smul.u32 2, %s180
          %s182 = ssub.s32 3, %s181
          %p183 = scmp.lt.s32.totalorder %s182, 2
          %s184 = scalar_select %p183, %s182, 2
          %s185 = smul.u32 128, %s184
        $region24: #{tpu_custom_call.1} parent=15 // pred_fallthru
          _
      $region16: #{tpu_custom_call.1} parent=5 // pred_fallthru
        _
      %p186 = scmp.le.s32.totalorder 1, %s11
      %p187 = scmp.lt.s32.totalorder %s11, 3
      %p188 = pnand %p186, %p187
      %p189 = pneg %p188
      // Predicated region
      $region25: #{tpu_custom_call.1} parent=5 // pred_check
        _
      $region26: #{tpu_custom_call.1} parent=5 // pred_check_branch
        %191 = sbr.rel (%p188) target = $region28
      $region27: #{tpu_custom_call.1} parent=5 // pred_region
        %s192 = ssub.s32 %s11, 1
        %s193 = smul.u32 %s20, 2
        %s194 = sadd.s32 %s193, %s21
        %p195 = scmp.lt.s32.totalorder %s194, 1
        %s196 = scalar_select %p195, %s194, 1
        %s197 = smul.u32 2, %s196
        %s198 = ssub.s32 3, %s197
        %p199 = scmp.lt.s32.totalorder %s198, 2
        %s200 = scalar_select %p199, %s198, 2
        %s201 = smul.u32 128, %s200
        %p202 = scmp.lt.s32.totalorder %s197, 2
        %s203 = scalar_select %p202, %s197, 2
        %s204 = smul.addr %s203, 8
        %s205 = scalar_lea.vmem %s1, %s204
        %p206 = pneg %p57
        %p207 = pneg %p54
        %s208 = smul.u32 %s20, 2
        %s209 = sadd.s32 %s208, %s21
        %p210 = scmp.lt.s32.totalorder %s209, 1
        %s211 = scalar_select %p210, %s209, 1
        %s212 = smul.u32 2, %s211
        %s213 = ssub.s32 3, %s212
        %p214 = scmp.lt.s32.totalorder %s213, 2
        %s215 = scalar_select %p214, %s213, 2
        %s216 = smul.u32 128, %s215
        %p217 = scmp.lt.s32.totalorder %s212, 2
        %s218 = scalar_select %p217, %s212, 2
        %s219 = smul.addr %s218, 8
        %s220 = scalar_lea.vmem %s2, %s219
        %p221 = pneg %p91
        %p222 = pneg %p88
        %p223 = pneg %p117
        %p224 = pneg %p114
        %s225 = smul.u32 %s20, 2
        %s226 = sadd.s32 %s225, %s21
        %p227 = scmp.lt.s32.totalorder %s226, 1
        %s228 = scalar_select %p227, %s226, 1
        %s229 = smul.u32 2, %s228
        %s230 = ssub.s32 3, %s229
        %p231 = scmp.lt.s32.totalorder %s230, 2
        %s232 = scalar_select %p231, %s230, 2
        %s233 = smul.u32 128, %s232
        %p234 = scmp.lt.s32.totalorder %s229, 2
        %s235 = scalar_select %p234, %s229, 2
        %s236 = smul.addr %s235, 8
        %s237 = scalar_lea.vmem %s1, %s236
        %s238 = smul.u32 %s20, 2
        %s239 = sadd.s32 %s238, %s21
        %p240 = scmp.lt.s32.totalorder %s239, 1
        %s241 = scalar_select %p240, %s239, 1
        %s242 = smul.u32 2, %s241
        %s243 = ssub.s32 3, %s242
        %p244 = scmp.lt.s32.totalorder %s243, 2
        %s245 = scalar_select %p244, %s243, 2
        %s246 = smul.u32 128, %s245
        %s247 = smul.u32 %s20, 2
        %s248 = sadd.s32 %s247, %s21
        %p249 = scmp.lt.s32.totalorder %s248, 1
        %s250 = scalar_select %p249, %s248, 1
        %s251 = smul.u32 2, %s250
        %s252 = ssub.s32 3, %s251
        %p253 = scmp.lt.s32.totalorder %s252, 2
        %s254 = scalar_select %p253, %s252, 2
        %s255 = smul.u32 128, %s254
        %p256 = scmp.lt.s32.totalorder %s251, 2
        %s257 = scalar_select %p256, %s251, 2
        %s258 = smul.addr %s257, 8
        %s259 = scalar_lea.vmem %s2, %s258
        %s260 = smul.u32 %s20, 2
        %s261 = sadd.s32 %s260, %s21
        %p262 = scmp.lt.s32.totalorder %s261, 1
        %s263 = scalar_select %p262, %s261, 1
        %s264 = smul.u32 2, %s263
        %s265 = ssub.s32 3, %s264
        %p266 = scmp.lt.s32.totalorder %s265, 2
        %s267 = scalar_select %p266, %s265, 2
        %s268 = smul.u32 128, %s267
        %s269 = smul.u32 %s20, 2
        %s270 = sadd.s32 %s269, %s21
        %p271 = scmp.eq.s32.totalorder %s21, 0
        // Predicated region
        $region29: #{tpu_custom_call.1} parent=27 // pred_check
          %p272 = pneg %p271
        $region30: #{tpu_custom_call.1} parent=27 // pred_check_branch
          %274 = sbr.rel (%p272) target = $region32
        $region31: #{tpu_custom_call.1} parent=27 // pred_region
          %vm275 = vcmask 7168
          %276 = vst.msk [vmem:[#allocation2] sm:$0xff] %vm275, 0.0
          %277 = vst.msk [vmem:[#allocation2 + $0x8] sm:$0xff] %vm275, 0.0
        $region32: #{tpu_custom_call.1} parent=27 // pred_fallthru
          _
        %v278 = vld [vmem:[%s237] sm:$0xff]
        %v279 = vld [vmem:[%s237 + $0x8] sm:$0xff]
        %v280 = vld [vmem:[%s259] sm:$0xff]
        %v281 = vld [vmem:[%s259 + $0x8] sm:$0xff]
        %v282 = vlaneseq
        %v283 = vshrl.u32 %v282, 7
        %v284 = vadd.s32 %v283, 8
        %s285 = smul.u32 %s270, 16
        %v286 = vstv %s285
        %v287 = vadd.s32 %v286, %v283
        %v288 = vadd.s32 %v286, %v284
        %s289 = sld [smem:[#allocation4]]
        %v290 = vstv %s289
        %vm291 = vcmp.lt.s32.totalorder %v287, %v290
        %vm292 = vcmp.lt.s32.totalorder %v288, %v290
        %v293 = vsel %vm291, 1, 0
        %v294 = vsel %vm292, 1, 0
        %vm295 = vcmp.eq.s32.totalorder %v293, 1
        %vm296 = vcmp.eq.s32.totalorder %v294, 1
        %v297 = vsel %vm295, %v278, 0.0
        %v298 = vsel %vm296, %v279, 0.0
        %v299 = vlaneseq
        %v300 = vand.u32 %v299, 127
        %301 = vset.pattern.permute.xlu0 0
        %302 = vperm.xlu0 %301, %v280
        %v303 = vpop.permute.xlu0 %302
        %304 = vset.pattern.permute.xlu0 0
        %305 = vperm.xlu0 %304, %v281
        %v306 = vpop.permute.xlu0 %305
        %vm307 = vcmp.eq.s32.totalorder %v300, %v303
        %vm308 = vcmp.eq.s32.totalorder %v300, %v306
        %vm309 = vcmask 80896
        %v310 = vsel %vm309, %v297, -inf
        %311 = vmax.xlane.f32.xlu0 %v310
        %v312 = vpop.xlane.xlu0 %311
        %v313 = vsel %vm309, %v298, -inf
        %314 = vmax.xlane.f32.xlu0 %v313
        %v315 = vpop.xlane.xlu0 %314
        %v316 = vsub.f32 %v297, %v312
        %v317 = vsub.f32 %v298, %v315
        %v318 = vmul.f32 %v316, 1.442695
        %v319 = vpow.pop %v318
        %v320 = vmul.f32 %v317, 1.442695
        %v321 = vpow.pop %v320
        %v322 = vsel %vm309, %v319, 0.0
        %323 = vadd.xlane.f32.xlu0 %v322
        %v324 = vpop.xlane.xlu0 %323
        %v325 = vsel %vm309, %v321, 0.0
        %326 = vadd.xlane.f32.xlu0 %v325
        %v327 = vpop.xlane.xlu0 %326
        %v328 = vlog2.pop %v324
        %v329 = vmul.f32 %v328, 0.6931472
        %v330 = vlog2.pop %v327
        %v331 = vmul.f32 %v330, 0.6931472
        %v332 = vsub.f32 %v316, %v329
        %v333 = vsub.f32 %v317, %v331
        %v334 = vsel %vm307, %v332, 0.0
        %v335 = vsel %vm308, %v333, 0.0
        %v336 = vsel %vm309, %v334, 0.0
        %337 = vadd.xlane.f32.xlu0 %v336
        %v338 = vpop.xlane.xlu0 %337
        %v339 = vsel %vm309, %v335, 0.0
        %340 = vadd.xlane.f32.xlu0 %v339
        %v341 = vpop.xlane.xlu0 %340
        %v342 = vmul.f32 %v338, 1.442695
        %v343 = vpow.pop %v342
        %v344 = vmul.f32 %v341, 1.442695
        %v345 = vpow.pop %v344
        %v346 = vsub.f32 1.0, %v343
        %v347 = vsub.f32 1.0, %v345
        %v348 = vmax.f32 %v332, -16.118095
        %v349 = vmax.f32 %v333, -16.118095
        %v350 = vmul.f32 %v348, 0.7
        %v351 = vmul.f32 %v349, 0.7
        %v352 = vmul.f32 %v350, 1.442695
        %v353 = vpow.pop %v352
        %v354 = vmul.f32 %v351, 1.442695
        %v355 = vpow.pop %v354
        %v356 = vmax.f32 %v338, -16.118095
        %v357 = vmax.f32 %v341, -16.118095
        %v358 = vmul.f32 %v356, 0.7
        %v359 = vmul.f32 %v357, 0.7
        %v360 = vmul.f32 %v358, 1.442695
        %v361 = vpow.pop %v360
        %v362 = vmul.f32 %v359, 1.442695
        %v363 = vpow.pop %v362
        %v364 = vsel %vm309, %v353, 0.0
        %365 = vadd.xlane.f32.xlu0 %v364
        %v366 = vpop.xlane.xlu0 %365
        %v367 = vsel %vm309, %v355, 0.0
        %368 = vadd.xlane.f32.xlu0 %v367
        %v369 = vpop.xlane.xlu0 %368
        %v370 = vsub.f32 10.0, %v366
        %v371 = vsub.f32 10.0, %v369
        %v372 = vsub.f32 1.0, %v361
        %v373 = vsub.f32 1.0, %v363
        %v374 = vrcp.pop %v370
        %v375 = vmul.f32 %v372, %v374
        %v376 = vrcp.pop %v371
        %v377 = vmul.f32 %v373, %v376
        %v378 = vld [vmem:[#allocation2] sm:$0xff]
        %v379 = vld [vmem:[#allocation2 + $0x8] sm:$0xff]
        %v380 = vadd.f32 %v375, %v346
        %v381 = vadd.f32 %v377, %v347
        %v382 = vsel %vm291, %v380, 0.0
        %v383 = vsel %vm292, %v381, 0.0
        %v384 = vadd.f32 %v378, %v382
        %v385 = vadd.f32 %v379, %v383
        %vm386 = vcmask 7168
        %387 = vst.msk [vmem:[#allocation2] sm:$0xff] %vm386, %v384
        %388 = vst.msk [vmem:[#allocation2 + $0x8] sm:$0xff] %vm386, %v385
        %p389 = scmp.eq.s32.totalorder %s21, 1
        // Predicated region
        $region33: #{tpu_custom_call.1} parent=27 // pred_check
          %p390 = pneg %p389
        $region34: #{tpu_custom_call.1} parent=27 // pred_check_branch
          %392 = sbr.rel (%p390) target = $region36
        $region35: #{tpu_custom_call.1} parent=27 // pred_region
          %v393 = vld [vmem:[#allocation2] sm:$0xff]
          %v394 = vld [vmem:[#allocation2 + $0x8] sm:$0xff]
          %v395 = vsel %vm386, %v393, 0.0
          %v396 = vsel %vm386, %v394, 0.0
          %v397 = vadd.f32 %v395, %v396
          %398 = vadd.xlane.f32.xlu0 %v397
          %v399 = vpop.xlane.xlu0 %398
          %v400 = vrot.slane %v399, 4
          %v401 = vadd.f32 %v399, %v400
          %v402 = vrot.slane %v401, 2
          %v403 = vadd.f32 %v401, %v402
          %v404 = vrot.slane %v403, 1
          %v405 = vadd.f32 %v403, %v404
          %s406 = vtos %v405
          %v407 = vstv %s406
          %v408 = vadd.f32 %v407, 0.0
          %409 = vst [vmem:[#allocation5] sm:$0xff] %v408
        $region36: #{tpu_custom_call.1} parent=27 // pred_fallthru
          _
        // Predicated region
        $region37: #{tpu_custom_call.1} parent=27 // pred_check
          %p410 = pneg %p114
        $region38: #{tpu_custom_call.1} parent=27 // pred_check_branch
          %412 = sbr.rel (%p410) target = $region40
        $region39: #{tpu_custom_call.1} parent=27 // pred_region
          %s414 = ssub.s32 128, 128
          %415 = vsyncadd [#allocation6], %s414
          %s416 = smul.addr %s20, 128
          %s417 = scalar_lea.hbm %s3, %s416
          %s419 = sshll.u32 [#allocation5], 4
          %s420 = int_to_ptr.vmem [resolvable:$true] %s419
          %422 = dma.vmem_to_hbm [thread:$0]  %s420, 128, %s417, [#allocation6]
        $region40: #{tpu_custom_call.1} parent=27 // pred_fallthru
          _
        // Predicated region
        $region41: #{tpu_custom_call.1} parent=27 // pred_check
          %p423 = pneg %p114
        $region42: #{tpu_custom_call.1} parent=27 // pred_check_branch
          %425 = sbr.rel (%p423) target = $region44
        $region43: #{tpu_custom_call.1} parent=27 // pred_region
          %426 = dma.done [#allocation6], 128
        $region44: #{tpu_custom_call.1} parent=27 // pred_fallthru
          _
      $region28: #{tpu_custom_call.1} parent=5 // pred_fallthru
        _
      %p427 = scmp.le.s32.totalorder 2, %s11
      // Predicated region
      $region45: #{tpu_custom_call.1} parent=5 // pred_check
        %p428 = pneg %p427
      $region46: #{tpu_custom_call.1} parent=5 // pred_check_branch
        %430 = sbr.rel (%p428) target = $region48
      $region47: #{tpu_custom_call.1} parent=5 // pred_region
        %s431 = ssub.s32 %s11, 2
      $region48: #{tpu_custom_call.1} parent=5 // pred_fallthru
        _
    $region6: #{tpu_custom_call.1} parent=1 // loop_footer
      %s15 = sadd.s32 1, %s11
    $region7: #{tpu_custom_call.1} parent=1 // loop_footer_branch
      %10 = sbr.rel target = $region3
    $region8: #{tpu_custom_call.1} parent=1 // loop_exit
      _
    %432 = vsyncpa [#allocation6], 1
    %s433 = scalar_lea.sflag [#allocation6], 1
    %434 = vsyncpa %s433, 1

</llo_original>
